<compile_context>
chip_gen: v7x
topology: tpu7x:2x2x1
jax: 0.10.0
libtpu: 0.0.40
codegen_flags: <defaults>
</compile_context>

<pallas_src>
import jax
import jax.numpy as jnp
from jax.experimental import pallas as pl
from jax.experimental.pallas import tpu as pltpu


def _round_up(x, m):
    return ((x + m - 1) // m) * m


def _vmem_ceiling_bytes():
    """Generation-aware usable-VMEM ceiling (v5e/v6e 128 MiB, v7x 64 MiB/TC)."""
    try:
        cap = int(pltpu.get_tpu_info().vmem_capacity_bytes)
    except Exception:  # interpret mode / older runtimes: be conservative.
        cap = 64 * 1024 * 1024
    return int(cap * 0.85)


def _pick_tm(M, cap):
    """Row tile: biggest multiple-of-8 tile bounded by cap; M is padded to it."""
    cap = max(8, (cap // 8) * 8)
    if M >= cap:
        return cap
    return _round_up(M, 8)


def _pick_divisor_tile(dim, cap, floor):
    """Largest 128-aligned tile <= cap dividing `dim`, else fall back to full dim."""
    t = max(floor, (cap // floor) * floor)
    while t > floor and dim % t != 0:
        t //= 2
    if dim % t == 0:
        return t
    return dim  # "block == full array dim" exception


# ----------------------------------------------------------------------------
# Kernels
# ----------------------------------------------------------------------------
def _linear_kernel_single_k(x_ref, w_ref, b_ref, o_ref):
    # x:(tm,K)  w:(K,tn)  b:(1,tn) f32  o:(tm,tn). Whole K in one tile -> no
    # accumulator scratch, single MXU pass, bias add fused into the store.
    # TODO(synk): fuse jax.nn.sigmoid here if the surrounding model applies it
    # to the logits (EUP slot is idle in this kernel).
    o_ref[...] = (
        jnp.dot(x_ref[...], w_ref[...], preferred_element_type=jnp.float32)
        + b_ref[...]
    ).astype(o_ref.dtype)


def _linear_kernel_multi_k(x_ref, w_ref, b_ref, o_ref, acc_ref):
    # K is tiled: f32 accumulator in VMEM, init by direct write (no zero + RMW).
    k = pl.program_id(2)
    prod = jnp.dot(x_ref[...], w_ref[...], preferred_element_type=jnp.float32)

    @pl.when(k == 0)
    def _():
        acc_ref[...] = prod

    @pl.when(k > 0)
    def _():
        acc_ref[...] += prod

    @pl.when(k == pl.num_programs(2) - 1)
    def _():
        o_ref[...] = (acc_ref[...] + b_ref[...]).astype(o_ref.dtype)


# ----------------------------------------------------------------------------
# Parameter prep (hoisted out of the forward path)
# ----------------------------------------------------------------------------
def prepare_logistic_params(weight, bias, *, compute_dtype=jnp.bfloat16, lane=128):
    """W (out,in) -> (in, N_pad) in compute dtype; bias -> (1, N_pad) f32.

    Only N is padded (lane-dense, unmasked stores); K is left untouched so the
    activation never needs a K-pad copy on the hot path. Zero-padded N columns
    keep results exact and are sliced off after the kernel.
    """
    out_dim, in_dim = weight.shape
    n_pad = _round_up(out_dim, lane)

    wt = jnp.zeros((in_dim, n_pad), dtype=compute_dtype)
    wt = wt.at[:, :out_dim].set(weight.T.astype(compute_dtype))

    b = jnp.zeros((1, n_pad), dtype=jnp.float32)
    b = b.at[:, :out_dim].set(bias.astype(jnp.float32).reshape(1, out_dim))
    return wt, b, out_dim


# ----------------------------------------------------------------------------
# Forward
# ----------------------------------------------------------------------------
def logistic_forward(x, wt_padded, b_padded, out_dim, *,
                     tm_cap=1024, tn_cap=512, tk_cap=2048,
                     weight_resident_bytes=16 * 1024 * 1024):
    """x: (..., in_dim); wt_padded: (K, N_pad); b_padded: (1, N_pad) f32."""
    orig_dtype = x.dtype
    lead_shape = x.shape[:-1]
    in_dim = x.shape[-1]
    K, N_p = wt_padded.shape
    assert in_dim == K, "x feature dim must match the prepared weight"
    compute_dtype = wt_padded.dtype

    x2 = x.reshape(-1, in_dim)
    M = x2.shape[0]

    itemsize = jnp.dtype(compute_dtype).itemsize
    out_itemsize = jnp.dtype(orig_dtype).itemsize
    vmem_budget = _vmem_ceiling_bytes()

    # ---- tile selection ----------------------------------------------------
    # Keep the whole weight resident (1x1 j/k grid) when it fits: W is DMA'd
    # once for all row tiles. Otherwise fall back to 128-aligned divisor tiles.
    if K * N_p * itemsize <= weight_resident_bytes:
        tk, tn = K, N_p
    else:
        tk = _pick_divisor_tile(K, tk_cap, 128)
        tn = _pick_divisor_tile(N_p, tn_cap, 128)
    multi_k = tk != K

    # Pick tm first, then pad M to a multiple of it (no tm-collapse for odd M).
    tm = _pick_tm(M, tm_cap)

    def step_bytes(tm_, tn_, tk_):
        b = 2 * (tm_ * tk_ + tk_ * tn_) * itemsize + 2 * tn_ * 4
        b += 2 * tm_ * tn_ * out_itemsize
        if multi_k:
            b += tm_ * tn_ * 4
        return b

    # Shrink tiles (rows first, then columns) until the per-step footprint fits.
    while step_bytes(tm, tn, tk) > vmem_budget and tm > 8:
        tm = max(8, _round_up(tm // 2, 8))
    while step_bytes(tm, tn, tk) > vmem_budget and tn > 128:
        half = tn // 2
        if half % 128 != 0 or N_p % half != 0:
            break
        tn = half

    M_p = _round_up(M, tm)

    # v7x has 2 TensorCores: keep >= 2 parallel (i, j) grid points when there
    # is meaningful work, otherwise one core idles.
    if (M_p // tm) * (N_p // tn) == 1 and M_p >= 512 and tm >= 16:
        tm = max(8, _round_up(tm // 2, 8))
        M_p = _round_up(M, tm)

    # ---- activation: cast/pad only when actually needed ---------------------
    if x2.dtype != compute_dtype:
        x2 = x2.astype(compute_dtype)
    if M_p != M:
        x2 = jnp.pad(x2, ((0, M_p - M), (0, 0)))
    xp = x2

    cost = pl.CostEstimate(
        flops=2 * M_p * K * N_p,
        transcendentals=0,
        bytes_accessed=(M_p * K + K * N_p) * itemsize
        + N_p * 4
        + M_p * N_p * out_itemsize,
    )
    vmem_limit = int(min(max(2 * step_bytes(tm, tn, tk), 16 * 1024 * 1024),
                         vmem_budget))

    if not multi_k:
        grid = (M_p // tm, N_p // tn)
        out_padded = pl.pallas_call(
            _linear_kernel_single_k,
            out_shape=jax.ShapeDtypeStruct((M_p, N_p), orig_dtype),
            grid_spec=pltpu.PrefetchScalarGridSpec(
                num_scalar_prefetch=0,
                grid=grid,
                in_specs=[
                    pl.BlockSpec((tm, tk), lambda i, j: (i, 0)),
                    pl.BlockSpec((tk, tn), lambda i, j: (0, j)),
                    pl.BlockSpec((1, tn), lambda i, j: (0, j)),
                ],
                out_specs=pl.BlockSpec((tm, tn), lambda i, j: (i, j)),
            ),
            compiler_params=pltpu.CompilerParams(
                dimension_semantics=("parallel", "parallel"),
                vmem_limit_bytes=vmem_limit,
            ),
            cost_estimate=cost,
        )(xp, wt_padded, b_padded)
    else:
        grid = (M_p // tm, N_p // tn, K // tk)
        out_padded = pl.pallas_call(
            _linear_kernel_multi_k,
            out_shape=jax.ShapeDtypeStruct((M_p, N_p), orig_dtype),
            grid_spec=pltpu.PrefetchScalarGridSpec(
                num_scalar_prefetch=0,
                grid=grid,
                in_specs=[
                    pl.BlockSpec((tm, tk), lambda i, j, k: (i, k)),
                    pl.BlockSpec((tk, tn), lambda i, j, k: (k, j)),
                    pl.BlockSpec((1, tn), lambda i, j, k: (0, j)),
                ],
                out_specs=pl.BlockSpec((tm, tn), lambda i, j, k: (i, j)),
                scratch_shapes=[pltpu.VMEM((tm, tn), jnp.float32)],
            ),
            compiler_params=pltpu.CompilerParams(
                dimension_semantics=("parallel", "parallel", "arbitrary"),
                vmem_limit_bytes=vmem_limit,
            ),
            cost_estimate=cost,
        )(xp, wt_padded, b_padded)

    out = out_padded
    if M_p != M or N_p != out_dim:
        out = out[:M, :out_dim]
    return out.reshape(*lead_shape, out_dim)


if __name__ == "__main__":
    key = jax.random.PRNGKey(0)
    kx, kw, kb = jax.random.split(key, 3)

    batch, in_dim, out_dim = 8, 32, 16

    # Deterministic synthetic parameters (same shapes as nn.Linear(in_dim, out_dim)).
    x = jax.random.normal(kx, (batch, in_dim), dtype=jnp.float32)
    weight = jax.random.normal(kw, (out_dim, in_dim), dtype=jnp.float32) * 0.1
    bias = jax.random.normal(kb, (out_dim,), dtype=jnp.float32) * 0.1

    ref = x @ weight.T + bias

    # Exact path (f32 compute) — bit-comparable to the f32 PyTorch module.
    wt32, b32, n_out = prepare_logistic_params(weight, bias, compute_dtype=jnp.float32)
    out32 = jax.block_until_ready(logistic_forward(x, wt32, b32, n_out))
    assert out32.shape == (batch, out_dim)
    assert jnp.allclose(out32, ref, atol=1e-5, rtol=1e-5), "f32 path mismatch vs reference"

    # Fast path (default: bf16 weights/activations, f32 accumulate + f32 bias).
    wtbf, bbf, n_out = prepare_logistic_params(weight, bias)
    outbf = jax.block_until_ready(logistic_forward(x, wtbf, bbf, n_out))
    assert outbf.shape == (batch, out_dim)
    assert jnp.allclose(outbf, ref, atol=5e-2, rtol=5e-2), "bf16 path mismatch vs reference"

    print("KERNEL_OK")
</pallas_src>

<mosaic_0001>
module attributes {stable_mosaic.version = 11 : i64} {
  func.func @_linear_kernel_single_k(%arg0: i32, %arg1: i32, %arg2: memref<8x32xf32, #tpu.memory_space<vmem>>, %arg3: memref<32x128xf32, #tpu.memory_space<vmem>>, %arg4: memref<1x128xf32, #tpu.memory_space<vmem>>, %arg5: memref<8x128xf32, #tpu.memory_space<vmem>>) attributes {dimension_semantics = [#tpu.dimension_semantics<parallel>, #tpu.dimension_semantics<parallel>], iteration_bounds = array<i64: 1, 1>, scalar_prefetch = 0 : i64, scratch_operands = 0 : i64, tpu.core_type = #tpu.core_type<tc>, window_params = [{transform_indices = @transform_0, window_bounds = array<i64: 8, 32>}, {transform_indices = @transform_1, window_bounds = array<i64: 32, 128>}, {transform_indices = @transform_2, window_bounds = array<i64: 1, 128>}, {transform_indices = @transform_3, window_bounds = array<i64: 8, 128>}]} {
    %c0 = arith.constant 0 : index
    %c0_0 = arith.constant 0 : index
    %0 = vector.load %arg2[%c0, %c0_0] : memref<8x32xf32, #tpu.memory_space<vmem>>, vector<8x32xf32>
    %c0_1 = arith.constant 0 : index
    %c0_2 = arith.constant 0 : index
    %1 = vector.load %arg3[%c0_1, %c0_2] : memref<32x128xf32, #tpu.memory_space<vmem>>, vector<32x128xf32>
    %cst = arith.constant dense<0.000000e+00> : vector<8x128xf32>
    %2 = tpu.matmul %0, %1, %cst {dimension_numbers = #tpu.dot_dimension_numbers<[1], [0], [0], [1], [0, 0, 1, 1], [], []>} : vector<8x32xf32>, vector<32x128xf32>, vector<8x128xf32> -> vector<8x128xf32>
    %c0_3 = arith.constant 0 : index
    %c0_4 = arith.constant 0 : index
    %3 = vector.load %arg4[%c0_3, %c0_4] : memref<1x128xf32, #tpu.memory_space<vmem>>, vector<1x128xf32>
    %4 = vector.broadcast %3 : vector<1x128xf32> to vector<8x128xf32>
    %5 = arith.addf %2, %4 : vector<8x128xf32>
    %c0_5 = arith.constant 0 : index
    %c0_6 = arith.constant 0 : index
    %6 = vector.load %arg5[%c0_5, %c0_6] : memref<8x128xf32, #tpu.memory_space<vmem>>, vector<8x128xf32>
    tpu.vector_store %arg5[%c0_5, %c0_6], %5 {strides = array<i32>} : memref<8x128xf32, #tpu.memory_space<vmem>>, vector<8x128xf32>,
    return
  }
  func.func @transform_0(%arg0: i32, %arg1: i32) -> (i32, i32) {
    %c0_i32 = arith.constant 0 : i32
    %c0_i32_0 = arith.constant 0 : i32
    return %arg0, %c0_i32 : i32, i32
  }
  func.func @transform_1(%arg0: i32, %arg1: i32) -> (i32, i32) {
    %c0_i32 = arith.constant 0 : i32
    %c0_i32_0 = arith.constant 0 : i32
    return %c0_i32, %arg1 : i32, i32
  }
  func.func @transform_2(%arg0: i32, %arg1: i32) -> (i32, i32) {
    %c0_i32 = arith.constant 0 : i32
    %c0_i32_0 = arith.constant 0 : i32
    return %c0_i32, %arg1 : i32, i32
  }
  func.func @transform_3(%arg0: i32, %arg1: i32) -> (i32, i32) {
    %c0_i32 = arith.constant 0 : i32
    return %arg0, %arg1 : i32, i32
  }
}

</mosaic_0001>

<llo_original>
// kernel: tpu_custom_call.1
$region0: #{tpu_custom_call.1}
  #allocation0 [shape = 'u32[]', space=smem, size = 0x4, offset = 0x4, fixed_abs, tag = 'smem constant byte address 0x4 - core index']
  #allocation1 [shape = 'u32[144,128]{1,0:T(1,128)}', space=vmem, size = 0x12000, scoped, tag = 'internal scratch']
  %s0 = inlined_call_operand.hbm [shape: f32[8,32], index: 0, kind: input, shape index: {}]
  %s1 = inlined_call_operand.hbm [shape: f32[32,128], index: 1, kind: input, shape index: {}]
  %s2 = inlined_call_operand.vmem [shape: f32[1,128], index: 2, kind: input, shape index: {}]
  %s3 = inlined_call_operand.hbm [shape: f32[8,128], index: 3, kind: output, shape index: {}]
  %s4 = sld [smem:[#allocation0]]
  $region30: #{tpu_custom_call.1} parent=0
    _
  %s6 = ssub.s32 1, %s4
  %s7 = scalar_select 0, %s6, %s4
  $region1: #{tpu_custom_call.1} parent=0
    #allocation2 [shape = 'u8[4096]{0}', space=vmem, size = 0x1000, scoped, tag = 'input window, operand 0, single buffered']
    #allocation3 [shape = 's32[1]{0}', space=sflag, size = 0x4, scoped, tag = 'scoped memory for tpu_custom_call.1']
    #allocation4 [shape = 's32[1]{0}', space=sflag, size = 0x4, scoped, tag = 'scoped memory for tpu_custom_call.1']
    #allocation5 [shape = 'u8[16384]{0}', space=vmem, size = 0x4000, scoped, tag = 'input window, operand 1, single buffered']
    #allocation6 [shape = 's32[1]{0}', space=sflag, size = 0x4, scoped, tag = 'scoped memory for tpu_custom_call.1']
    #allocation7 [shape = 'u8[4096]{0}', space=vmem, size = 0x1000, scoped, tag = 'output window, operand 0, single buffered']
    %8 = vsyncpa [#allocation3], 0
    %9 = vsyncpa [#allocation6], 0
    %10 = vsyncpa [#allocation4], 0
    // Predicated region
    $region2: #{tpu_custom_call.1} parent=1 // pred_check
      _
    $region3: #{tpu_custom_call.1} parent=1 // pred_check_branch
      %12 = sbr.rel (0) target = $region5
    $region4: #{tpu_custom_call.1} parent=1 // pred_region
      %s14 = ssub.s32 128, 128
      %15 = vsyncadd [#allocation3], %s14
      %s17 = sshll.u32 [#allocation2], 4
      %s18 = int_to_ptr.vmem [resolvable:$true] %s17
      %20 = dma.hbm_to_vmem [thread:$0]  %s0, 128, %s18, [#allocation3]
    $region5: #{tpu_custom_call.1} parent=1 // pred_fallthru
      _
    // Predicated region
    $region6: #{tpu_custom_call.1} parent=1 // pred_check
      _
    $region7: #{tpu_custom_call.1} parent=1 // pred_check_branch
      %22 = sbr.rel (0) target = $region9
    $region8: #{tpu_custom_call.1} parent=1 // pred_region
      %s24 = ssub.s32 512, 512
      %25 = vsyncadd [#allocation6], %s24
      %s26 = sshll.u32 [#allocation5], 4
      %s27 = int_to_ptr.vmem [resolvable:$true] %s26
      %32 = dma.hbm_to_vmem [thread:$0]  %s1, 512, %s27, [#allocation6], 128, 128, 8
    $region9: #{tpu_custom_call.1} parent=1 // pred_fallthru
      _
    // Predicated region
    $region10: #{tpu_custom_call.1} parent=1 // pred_check
      _
    $region11: #{tpu_custom_call.1} parent=1 // pred_check_branch
      %34 = sbr.rel (0) target = $region13
    $region12: #{tpu_custom_call.1} parent=1 // pred_region
      _
    $region13: #{tpu_custom_call.1} parent=1 // pred_fallthru
      _
    // Predicated region
    $region14: #{tpu_custom_call.1} parent=1 // pred_check
      _
    $region15: #{tpu_custom_call.1} parent=1 // pred_check_branch
      %36 = sbr.rel (0) target = $region17
    $region16: #{tpu_custom_call.1} parent=1 // pred_region
      %37 = dma.done [#allocation3], 128
    $region17: #{tpu_custom_call.1} parent=1 // pred_fallthru
      _
    // Predicated region
    $region18: #{tpu_custom_call.1} parent=1 // pred_check
      _
    $region19: #{tpu_custom_call.1} parent=1 // pred_check_branch
      %39 = sbr.rel (0) target = $region21
    $region20: #{tpu_custom_call.1} parent=1 // pred_region
      %40 = dma.done [#allocation6], 512
    $region21: #{tpu_custom_call.1} parent=1 // pred_fallthru
      _
    %v41 = vld [vmem:[#allocation2] sm:$0xff]
    %v42 = vld [vmem:[#allocation5] sm:$0xff]
    %v43 = vld [vmem:[#allocation5 + $0x8] sm:$0xff]
    %v44 = vld [vmem:[#allocation5 + $0x10] sm:$0xff]
    %v45 = vld [vmem:[#allocation5 + $0x18] sm:$0xff]
    %v46 = vld [vmem:[%s2] sm:$0x1]
    %v48 = vlaneseq
    %v49 = vshrl.u32 %v48, 7
    %v50 = vsub.s32 0, %v49
    %v51 = vrot.slane %v46, %v50
    %vm53 = vcmask 261120
    %v55 = vsel %vm53, %v41, 0
    %57 = vmatprep.subr.mxu0 0.0
    %58 = vmatpush1.msra.mxu0 %v42
    %59 = vmatprep.subr.mxu0 0.0
    %60 = vmatpush1.msra.mxu0 %v43
    %61 = vmatprep.subr.mxu0 0.0
    %62 = vmatpush1.msra.mxu0 %v44
    %63 = vmatprep.subr.mxu0 0.0
    %64 = vmatpush1.msra.mxu0 %v45
    %65 = vmatprep.subr.mxu0 0.0
    %66 = vmatpush1.msra.mxu0 0.0
    %67 = vmatprep.subr.mxu0 0.0
    %68 = vmatpush1.msra.mxu0 0.0
    %69 = vmatprep.subr.mxu0 0.0
    %70 = vmatpush1.msra.mxu0 0.0
    %71 = vmatprep.subr.mxu0 0.0
    %72 = vmatpush1.msra.mxu0 0.0
    %73 = vmatprep.subr.mxu0 0.0
    %74 = vmatpush1.msra.mxu0 0.0
    %75 = vmatprep.subr.mxu0 0.0
    %76 = vmatpush1.msra.mxu0 0.0
    %77 = vmatprep.subr.mxu0 0.0
    %78 = vmatpush1.msra.mxu0 0.0
    %79 = vmatprep.subr.mxu0 0.0
    %80 = vmatpush1.msra.mxu0 0.0
    %81 = vmatprep.subr.mxu0 0.0
    %82 = vmatpush1.msra.mxu0 0.0
    %83 = vmatprep.subr.mxu0 0.0
    %84 = vmatpush1.msra.mxu0 0.0
    %85 = vmatprep.subr.mxu0 0.0
    %86 = vmatpush1.msra.mxu0 0.0
    %87 = vmatprep.subr.mxu0 0.0
    %88 = vmatpush1.msra.mxu0 0.0
    %89 = vmatprep.subr.mxu0 0.0
    %90 = vmatpush1.msra.mxu0 0.0
    %91 = vmatprep.subr.mxu0 0.0
    %92 = vmatpush1.msra.mxu0 0.0
    %93 = vmatprep.subr.mxu0 0.0
    %94 = vmatpush1.msra.mxu0 0.0
    %95 = vmatprep.subr.mxu0 0.0
    %96 = vmatpush1.msra.mxu0 0.0
    %97 = vmatprep.subr.mxu0 0.0
    %98 = vmatpush1.msra.mxu0 0.0
    %99 = vmatprep.subr.mxu0 0.0
    %100 = vmatpush1.msra.mxu0 0.0
    %101 = vmatprep.subr.mxu0 0.0
    %102 = vmatpush1.msra.mxu0 0.0
    %103 = vmatprep.subr.mxu0 0.0
    %104 = vmatpush1.msra.mxu0 0.0
    %105 = vmatprep.subr.mxu0 0.0
    %106 = vmatpush1.msra.mxu0 0.0
    %107 = vmatprep.subr.mxu0 0.0
    %108 = vmatpush1.msra.mxu0 0.0
    %109 = vmatprep.subr.mxu0 0.0
    %110 = vmatpush1.msra.mxu0 0.0
    %111 = vmatprep.subr.mxu0 0.0
    %112 = vmatpush1.msra.mxu0 0.0
    %113 = vmatprep.subr.mxu0 0.0
    %114 = vmatpush1.msra.mxu0 0.0
    %115 = vmatprep.subr.mxu0 0.0
    %116 = vmatpush1.msra.mxu0 0.0
    %117 = vmatprep.subr.mxu0 0.0
    %118 = vmatpush1.msra.mxu0 0.0
    %119 = vmatprep.subr.mxu0 0.0
    %120 = vmatpush1.msra.mxu0 0.0
    %121 = vmatprep.mubr.f32.mxu0 0.0
    %122 = vmatmul.mubr.f32.gmra.mrb[0].mxu0 %v55
    %v123 = vpop.f32.mrb[0].mxu0
    %v124 = vadd.f32 %v51, %v123
    %v125 = vpop.f32.mrb[0].mxu0
    %126 = vdwg.mxu0
    %127 = vst [vmem:[#allocation7] sm:$0xff] %v124
    // Predicated region
    $region22: #{tpu_custom_call.1} parent=1 // pred_check
      _
    $region23: #{tpu_custom_call.1} parent=1 // pred_check_branch
      %129 = sbr.rel (0) target = $region25
    $region24: #{tpu_custom_call.1} parent=1 // pred_region
      %s131 = ssub.s32 128, 128
      %132 = vsyncadd [#allocation4], %s131
      %s134 = sshll.u32 [#allocation7], 4
      %s135 = int_to_ptr.vmem [resolvable:$true] %s134
      %137 = dma.vmem_to_hbm [thread:$0]  %s135, 128, %s3, [#allocation4]
    $region25: #{tpu_custom_call.1} parent=1 // pred_fallthru
      _
    // Predicated region
    $region26: #{tpu_custom_call.1} parent=1 // pred_check
      _
    $region27: #{tpu_custom_call.1} parent=1 // pred_check_branch
      %139 = sbr.rel (0) target = $region29
    $region28: #{tpu_custom_call.1} parent=1 // pred_region
      %140 = dma.done [#allocation4], 128
    $region29: #{tpu_custom_call.1} parent=1 // pred_fallthru
      _
    %141 = vsyncpa [#allocation3], 1
    %142 = vsyncpa [#allocation6], 1
    %143 = vsyncpa [#allocation4], 1

</llo_original>
